<compile_context>
chip_gen: v6e
topology: v6e:2x2x1
jax: 0.10.0
libtpu: 0.0.40
codegen_flags: <defaults>
</compile_context>

<pallas_src>
import jax
import jax.numpy as jnp
from jax.experimental import pallas as pl
from jax.experimental.pallas import tpu as pltpu

OUT_DIM = 21     # logical output width (fc_x)
OUT_PAD = 128    # lane-dense padded output width
DEFAULT_TB = 256 # batch tile: fills 256-wide MXU (v6e/v7x), multiple of 128 (v5e)


def dqn_kernel(x_ref,
               w1_ref, w2_ref, w3_ref, w4_ref, wx_ref,
               b1_ref, b2_ref, b3_ref, b4_ref, bx_ref,
               out_ref):
    """One batch tile: (x*W1+b1, relu) -> 3x(bf16 Linear + ReLU) -> f32 Linear -> tanh."""
    x = x_ref[...]                                               # [TB, 1] f32

    # fc1: contraction dim K=1 -> pure outer product, do it on the VPU.
    h1 = jnp.maximum(x * w1_ref[...] + b1_ref[...], 0.0)         # [TB, 128] f32
    # TODO(synk): dropout(p=0.5) is identity in eval mode; training-mode masking
    # (pltpu.prng_random_bits) intentionally not applied.

    # fc2 / fc3 / fc4: bf16 weights + bf16 activations on the MXU, f32 accum.
    h2 = jnp.maximum(
        jnp.dot(h1.astype(jnp.bfloat16), w2_ref[...],
                preferred_element_type=jnp.float32) + b2_ref[...], 0.0)   # [TB, 256]
    h3 = jnp.maximum(
        jnp.dot(h2.astype(jnp.bfloat16), w3_ref[...],
                preferred_element_type=jnp.float32) + b3_ref[...], 0.0)   # [TB, 512]
    h4 = jnp.maximum(
        jnp.dot(h3.astype(jnp.bfloat16), w4_ref[...],
                preferred_element_type=jnp.float32) + b4_ref[...], 0.0)   # [TB, 256]

    # fc_x in f32 (zero-padded to 128 output lanes) + tanh, lane-dense store.
    logits = jnp.dot(h4, wx_ref[...],
                     preferred_element_type=jnp.float32) + bx_ref[...]    # [TB, 128]
    out_ref[...] = jnp.tanh(logits)


def init_params(key):
    """Deterministic init mimicking torch.nn.Linear default U[-1/sqrt(in), 1/sqrt(in)].

    Weights stored transposed vs PyTorch: [in_features, out_features].
    Biases stored as [1, out_features].
    """
    dims = [(1, 128), (128, 256), (256, 512), (512, 256), (256, OUT_DIM)]
    params = []
    for (fan_in, fan_out) in dims:
        key, kw, kb = jax.random.split(key, 3)
        bound = 1.0 / jnp.sqrt(jnp.float32(fan_in))
        w = jax.random.uniform(kw, (fan_in, fan_out), jnp.float32, -bound, bound)
        b = jax.random.uniform(kb, (1, fan_out), jnp.float32, -bound, bound)
        params.append((w, b))
    return params


def prepare_params(params):
    """Pack params into the kernel's expected layout.

    Returns (w1_f32[1,128], w2_bf16[128,256], w3_bf16[256,512], w4_bf16[512,256],
             wx_f32[256,128], b1[1,128], b2[1,256], b3[1,512], b4[1,256], bx[1,128]).
    """
    (w1, b1), (w2, b2), (w3, b3), (w4, b4), (wx, bx) = params

    # Zero-pad fc_x weight/bias 21 -> 128 output lanes (padded lanes give tanh(0)=0).
    wx_pad = jnp.zeros((256, OUT_PAD), jnp.float32).at[:, :OUT_DIM].set(wx)
    bx_pad = jnp.zeros((1, OUT_PAD), jnp.float32).at[:, :OUT_DIM].set(bx)

    return (w1,
            w2.astype(jnp.bfloat16),
            w3.astype(jnp.bfloat16),
            w4.astype(jnp.bfloat16),
            wx_pad,
            b1, b2, b3, b4, bx_pad)


def dqn_forward(x, packed_params, *, tb=DEFAULT_TB):
    """x: [B, 1] float32 -> [B, 21] float32."""
    B = x.shape[0]
    w1, w2, w3, w4, wx, b1, b2, b3, b4, bx = packed_params

    # Batch tile: 256 for large batches (fills MXU M-dim); for small batches use a
    # multiple of 16 (bf16 LHS packs 16 rows per vreg) that is >= 16 and covers B.
    if B >= tb:
        TB = tb
    else:
        TB = max(16, ((B + 15) // 16) * 16)
    Bp = ((B + TB - 1) // TB) * TB
    if Bp != B:
        x = jnp.pad(x, ((0, Bp - B), (0, 0)))
    grid = (Bp // TB,)

    weight_like = lambda a: pl.BlockSpec(a.shape, lambda i: (0, 0))  # resident across tiles

    in_specs = [
        pl.BlockSpec((TB, 1), lambda i: (i, 0)),       # x: streamed per batch tile
        weight_like(w1), weight_like(w2), weight_like(w3),
        weight_like(w4), weight_like(wx),
        weight_like(b1), weight_like(b2), weight_like(b3),
        weight_like(b4), weight_like(bx),
    ]
    out_specs = pl.BlockSpec((TB, OUT_PAD), lambda i: (i, 0))

    # Cost hint so XLA can schedule/overlap this kernel sensibly.
    flops = 2 * Bp * (128 + 128 * 256 + 256 * 512 + 512 * 256 + 256 * OUT_PAD)
    bytes_accessed = (
        x.size * 4
        + w1.size * 4 + (w2.size + w3.size + w4.size) * 2 + wx.size * 4
        + (b1.size + b2.size + b3.size + b4.size + bx.size) * 4
        + Bp * OUT_PAD * 4)

    out_padded = pl.pallas_call(
        dqn_kernel,
        out_shape=jax.ShapeDtypeStruct((Bp, OUT_PAD), jnp.float32),
        grid=grid,
        in_specs=in_specs,
        out_specs=out_specs,
        cost_estimate=pl.CostEstimate(
            flops=flops, transcendentals=Bp * OUT_PAD,
            bytes_accessed=bytes_accessed),
        compiler_params=pltpu.CompilerParams(
            dimension_semantics=("parallel",)),   # v7x: shard tiles over both TCs
    )(x, w1, w2, w3, w4, wx, b1, b2, b3, b4, bx)

    # NOTE: if the consumer can take the 128-lane padded layout, return
    # out_padded directly and skip this extra slice pass.
    return out_padded[:B, :OUT_DIM]


def dqn_reference(x, params):
    """Pure-JAX reference with the same bf16 cast pattern as the kernel."""
    (w1, b1), (w2, b2), (w3, b3), (w4, b4), (wx, bx) = params
    h = jnp.maximum(x @ w1 + b1, 0.0)
    h = jnp.maximum(jnp.dot(h.astype(jnp.bfloat16), w2.astype(jnp.bfloat16),
                            preferred_element_type=jnp.float32) + b2, 0.0)
    h = jnp.maximum(jnp.dot(h.astype(jnp.bfloat16), w3.astype(jnp.bfloat16),
                            preferred_element_type=jnp.float32) + b3, 0.0)
    h = jnp.maximum(jnp.dot(h.astype(jnp.bfloat16), w4.astype(jnp.bfloat16),
                            preferred_element_type=jnp.float32) + b4, 0.0)
    return jnp.tanh(h @ wx + bx)


if __name__ == "__main__":
    key = jax.random.PRNGKey(0)
    key, kx_small, kx_big = jax.random.split(key, 3)

    params = init_params(key)
    packed = prepare_params(params)

    # Small, unaligned batch: exercises the pad-to-16 single-tile path.
    x_small = jax.random.normal(kx_small, (8, 1), dtype=jnp.float32)
    out_small = jax.block_until_ready(dqn_forward(x_small, packed))
    assert out_small.shape == (8, OUT_DIM), out_small.shape
    assert out_small.dtype == jnp.float32

    # MXU-sized batch: exercises the multi-tile grid (2 tiles of 256) with
    # resident weights and the parallel batch axis.
    x_big = jax.random.normal(kx_big, (512, 1), dtype=jnp.float32)
    out_big = jax.block_until_ready(dqn_forward(x_big, packed))
    assert out_big.shape == (512, OUT_DIM), out_big.shape

    # Correctness vs. pure-JAX reference (same bf16 matmul pattern).
    ref_small = dqn_reference(x_small, params)
    ref_big = dqn_reference(x_big, params)
    assert bool(jnp.all(jnp.isfinite(out_small))) and bool(jnp.all(jnp.isfinite(out_big)))
    assert bool(jnp.all(jnp.abs(out_big) <= 1.0))            # tanh range
    assert bool(jnp.allclose(out_small, ref_small, atol=1e-2)), \
        float(jnp.max(jnp.abs(out_small - ref_small)))
    assert bool(jnp.allclose(out_big, ref_big, atol=1e-2)), \
        float(jnp.max(jnp.abs(out_big - ref_big)))

    print("KERNEL_OK")
</pallas_src>

<mosaic_0001>
module attributes {stable_mosaic.version = 11 : i64} {
  func.func @dqn_kernel(%arg0: i32, %arg1: memref<16x1xf32, #tpu.memory_space<vmem>>, %arg2: memref<1x128xf32, #tpu.memory_space<vmem>>, %arg3: memref<128x256xbf16, #tpu.memory_space<vmem>>, %arg4: memref<256x512xbf16, #tpu.memory_space<vmem>>, %arg5: memref<512x256xbf16, #tpu.memory_space<vmem>>, %arg6: memref<256x128xf32, #tpu.memory_space<vmem>>, %arg7: memref<1x128xf32, #tpu.memory_space<vmem>>, %arg8: memref<1x256xf32, #tpu.memory_space<vmem>>, %arg9: memref<1x512xf32, #tpu.memory_space<vmem>>, %arg10: memref<1x256xf32, #tpu.memory_space<vmem>>, %arg11: memref<1x128xf32, #tpu.memory_space<vmem>>, %arg12: memref<16x128xf32, #tpu.memory_space<vmem>>) attributes {dimension_semantics = [#tpu.dimension_semantics<parallel>], iteration_bounds = array<i64: 1>, scalar_prefetch = 0 : i64, scratch_operands = 0 : i64, tpu.core_type = #tpu.core_type<tc>, window_params = [{transform_indices = @transform_0, window_bounds = array<i64: 16, 1>}, {pipeline_mode = #tpu.pipeline_mode<synchronous>, transform_indices = @transform_1, window_bounds = array<i64: 1, 128>}, {pipeline_mode = #tpu.pipeline_mode<synchronous>, transform_indices = @transform_2, window_bounds = array<i64: 128, 256>}, {pipeline_mode = #tpu.pipeline_mode<synchronous>, transform_indices = @transform_3, window_bounds = array<i64: 256, 512>}, {pipeline_mode = #tpu.pipeline_mode<synchronous>, transform_indices = @transform_4, window_bounds = array<i64: 512, 256>}, {pipeline_mode = #tpu.pipeline_mode<synchronous>, transform_indices = @transform_5, window_bounds = array<i64: 256, 128>}, {pipeline_mode = #tpu.pipeline_mode<synchronous>, transform_indices = @transform_6, window_bounds = array<i64: 1, 128>}, {pipeline_mode = #tpu.pipeline_mode<synchronous>, transform_indices = @transform_7, window_bounds = array<i64: 1, 256>}, {pipeline_mode = #tpu.pipeline_mode<synchronous>, transform_indices = @transform_8, window_bounds = array<i64: 1, 512>}, {pipeline_mode = #tpu.pipeline_mode<synchronous>, transform_indices = @transform_9, window_bounds = array<i64: 1, 256>}, {pipeline_mode = #tpu.pipeline_mode<synchronous>, transform_indices = @transform_10, window_bounds = array<i64: 1, 128>}, {transform_indices = @transform_11, window_bounds = array<i64: 16, 128>}]} {
    %c0 = arith.constant 0 : index
    %c0_0 = arith.constant 0 : index
    %0 = vector.load %arg1[%c0, %c0_0] : memref<16x1xf32, #tpu.memory_space<vmem>>, vector<16x1xf32>
    %c0_1 = arith.constant 0 : index
    %c0_2 = arith.constant 0 : index
    %1 = vector.load %arg2[%c0_1, %c0_2] : memref<1x128xf32, #tpu.memory_space<vmem>>, vector<1x128xf32>
    %2 = vector.broadcast %0 : vector<16x1xf32> to vector<16x128xf32>
    %3 = vector.broadcast %1 : vector<1x128xf32> to vector<16x128xf32>
    %4 = arith.mulf %2, %3 : vector<16x128xf32>
    %c0_3 = arith.constant 0 : index
    %c0_4 = arith.constant 0 : index
    %5 = vector.load %arg7[%c0_3, %c0_4] : memref<1x128xf32, #tpu.memory_space<vmem>>, vector<1x128xf32>
    %6 = vector.broadcast %5 : vector<1x128xf32> to vector<16x128xf32>
    %7 = arith.addf %4, %6 : vector<16x128xf32>
    %cst = arith.constant 0.000000e+00 : f32
    %8 = vector.broadcast %cst : f32 to vector<16x128xf32>
    %9 = arith.maximumf %7, %8 : vector<16x128xf32>
    %10 = arith.truncf %9 : vector<16x128xf32> to vector<16x128xbf16>
    %c0_5 = arith.constant 0 : index
    %c0_6 = arith.constant 0 : index
    %11 = vector.load %arg3[%c0_5, %c0_6] : memref<128x256xbf16, #tpu.memory_space<vmem>>, vector<128x256xbf16>
    %cst_7 = arith.constant dense<0.000000e+00> : vector<16x256xf32>
    %12 = tpu.matmul %10, %11, %cst_7 {dimension_numbers = #tpu.dot_dimension_numbers<[1], [0], [0], [1], [0, 0, 1, 1], [], []>} : vector<16x128xbf16>, vector<128x256xbf16>, vector<16x256xf32> -> vector<16x256xf32>
    %c0_8 = arith.constant 0 : index
    %c0_9 = arith.constant 0 : index
    %13 = vector.load %arg8[%c0_8, %c0_9] : memref<1x256xf32, #tpu.memory_space<vmem>>, vector<1x256xf32>
    %14 = vector.broadcast %13 : vector<1x256xf32> to vector<16x256xf32>
    %15 = arith.addf %12, %14 : vector<16x256xf32>
    %cst_10 = arith.constant 0.000000e+00 : f32
    %16 = vector.broadcast %cst_10 : f32 to vector<16x256xf32>
    %17 = arith.maximumf %15, %16 : vector<16x256xf32>
    %18 = arith.truncf %17 : vector<16x256xf32> to vector<16x256xbf16>
    %c0_11 = arith.constant 0 : index
    %c0_12 = arith.constant 0 : index
    %19 = vector.load %arg4[%c0_11, %c0_12] : memref<256x512xbf16, #tpu.memory_space<vmem>>, vector<256x512xbf16>
    %cst_13 = arith.constant dense<0.000000e+00> : vector<16x512xf32>
    %20 = tpu.matmul %18, %19, %cst_13 {dimension_numbers = #tpu.dot_dimension_numbers<[1], [0], [0], [1], [0, 0, 1, 1], [], []>} : vector<16x256xbf16>, vector<256x512xbf16>, vector<16x512xf32> -> vector<16x512xf32>
    %c0_14 = arith.constant 0 : index
    %c0_15 = arith.constant 0 : index
    %21 = vector.load %arg9[%c0_14, %c0_15] : memref<1x512xf32, #tpu.memory_space<vmem>>, vector<1x512xf32>
    %22 = vector.broadcast %21 : vector<1x512xf32> to vector<16x512xf32>
    %23 = arith.addf %20, %22 : vector<16x512xf32>
    %cst_16 = arith.constant 0.000000e+00 : f32
    %24 = vector.broadcast %cst_16 : f32 to vector<16x512xf32>
    %25 = arith.maximumf %23, %24 : vector<16x512xf32>
    %26 = arith.truncf %25 : vector<16x512xf32> to vector<16x512xbf16>
    %c0_17 = arith.constant 0 : index
    %c0_18 = arith.constant 0 : index
    %27 = vector.load %arg5[%c0_17, %c0_18] : memref<512x256xbf16, #tpu.memory_space<vmem>>, vector<512x256xbf16>
    %cst_19 = arith.constant dense<0.000000e+00> : vector<16x256xf32>
    %28 = tpu.matmul %26, %27, %cst_19 {dimension_numbers = #tpu.dot_dimension_numbers<[1], [0], [0], [1], [0, 0, 1, 1], [], []>} : vector<16x512xbf16>, vector<512x256xbf16>, vector<16x256xf32> -> vector<16x256xf32>
    %c0_20 = arith.constant 0 : index
    %c0_21 = arith.constant 0 : index
    %29 = vector.load %arg10[%c0_20, %c0_21] : memref<1x256xf32, #tpu.memory_space<vmem>>, vector<1x256xf32>
    %30 = vector.broadcast %29 : vector<1x256xf32> to vector<16x256xf32>
    %31 = arith.addf %28, %30 : vector<16x256xf32>
    %cst_22 = arith.constant 0.000000e+00 : f32
    %32 = vector.broadcast %cst_22 : f32 to vector<16x256xf32>
    %33 = arith.maximumf %31, %32 : vector<16x256xf32>
    %c0_23 = arith.constant 0 : index
    %c0_24 = arith.constant 0 : index
    %34 = vector.load %arg6[%c0_23, %c0_24] : memref<256x128xf32, #tpu.memory_space<vmem>>, vector<256x128xf32>
    %cst_25 = arith.constant dense<0.000000e+00> : vector<16x128xf32>
    %35 = tpu.matmul %33, %34, %cst_25 {dimension_numbers = #tpu.dot_dimension_numbers<[1], [0], [0], [1], [0, 0, 1, 1], [], []>} : vector<16x256xf32>, vector<256x128xf32>, vector<16x128xf32> -> vector<16x128xf32>
    %c0_26 = arith.constant 0 : index
    %c0_27 = arith.constant 0 : index
    %36 = vector.load %arg11[%c0_26, %c0_27] : memref<1x128xf32, #tpu.memory_space<vmem>>, vector<1x128xf32>
    %37 = vector.broadcast %36 : vector<1x128xf32> to vector<16x128xf32>
    %38 = arith.addf %35, %37 : vector<16x128xf32>
    %39 = math.tanh %38 : vector<16x128xf32>
    %c0_28 = arith.constant 0 : index
    %c0_29 = arith.constant 0 : index
    %40 = vector.load %arg12[%c0_28, %c0_29] : memref<16x128xf32, #tpu.memory_space<vmem>>, vector<16x128xf32>
    tpu.vector_store %arg12[%c0_28, %c0_29], %39 {strides = array<i32>} : memref<16x128xf32, #tpu.memory_space<vmem>>, vector<16x128xf32>,
    return
  }
  func.func @transform_0(%arg0: i32) -> (i32, i32) {
    %c0_i32 = arith.constant 0 : i32
    %c0_i32_0 = arith.constant 0 : i32
    return %arg0, %c0_i32 : i32, i32
  }
  func.func @transform_1(%arg0: i32) -> (i32, i32) {
    %c0_i32 = arith.constant 0 : i32
    %c0_i32_0 = arith.constant 0 : i32
    %c0_i32_1 = arith.constant 0 : i32
    return %c0_i32, %c0_i32_0 : i32, i32
  }
  func.func @transform_2(%arg0: i32) -> (i32, i32) {
    %c0_i32 = arith.constant 0 : i32
    %c0_i32_0 = arith.constant 0 : i32
    %c0_i32_1 = arith.constant 0 : i32
    return %c0_i32, %c0_i32_0 : i32, i32
  }
  func.func @transform_3(%arg0: i32) -> (i32, i32) {
    %c0_i32 = arith.constant 0 : i32
    %c0_i32_0 = arith.constant 0 : i32
    %c0_i32_1 = arith.constant 0 : i32
    return %c0_i32, %c0_i32_0 : i32, i32
  }
  func.func @transform_4(%arg0: i32) -> (i32, i32) {
    %c0_i32 = arith.constant 0 : i32
    %c0_i32_0 = arith.constant 0 : i32
    %c0_i32_1 = arith.constant 0 : i32
    return %c0_i32, %c0_i32_0 : i32, i32
  }
  func.func @transform_5(%arg0: i32) -> (i32, i32) {
    %c0_i32 = arith.constant 0 : i32
    %c0_i32_0 = arith.constant 0 : i32
    %c0_i32_1 = arith.constant 0 : i32
    return %c0_i32, %c0_i32_0 : i32, i32
  }
  func.func @transform_6(%arg0: i32) -> (i32, i32) {
    %c0_i32 = arith.constant 0 : i32
    %c0_i32_0 = arith.constant 0 : i32
    %c0_i32_1 = arith.constant 0 : i32
    return %c0_i32, %c0_i32_0 : i32, i32
  }
  func.func @transform_7(%arg0: i32) -> (i32, i32) {
    %c0_i32 = arith.constant 0 : i32
    %c0_i32_0 = arith.constant 0 : i32
    %c0_i32_1 = arith.constant 0 : i32
    return %c0_i32, %c0_i32_0 : i32, i32
  }
  func.func @transform_8(%arg0: i32) -> (i32, i32) {
    %c0_i32 = arith.constant 0 : i32
    %c0_i32_0 = arith.constant 0 : i32
    %c0_i32_1 = arith.constant 0 : i32
    return %c0_i32, %c0_i32_0 : i32, i32
  }
  func.func @transform_9(%arg0: i32) -> (i32, i32) {
    %c0_i32 = arith.constant 0 : i32
    %c0_i32_0 = arith.constant 0 : i32
    %c0_i32_1 = arith.constant 0 : i32
    return %c0_i32, %c0_i32_0 : i32, i32
  }
  func.func @transform_10(%arg0: i32) -> (i32, i32) {
    %c0_i32 = arith.constant 0 : i32
    %c0_i32_0 = arith.constant 0 : i32
    %c0_i32_1 = arith.constant 0 : i32
    return %c0_i32, %c0_i32_0 : i32, i32
  }
  func.func @transform_11(%arg0: i32) -> (i32, i32) {
    %c0_i32 = arith.constant 0 : i32
    %c0_i32_0 = arith.constant 0 : i32
    return %arg0, %c0_i32 : i32, i32
  }
}

</mosaic_0001>

<llo_original>
// kernel: tpu_custom_call.1
$region0: #{tpu_custom_call.1}
  #allocation0 [shape = 'u32[]', space=smem, size = 0x4, offset = 0x4, fixed_abs, tag = 'smem constant byte address 0x4 - core index']
  #allocation1 [shape = 'u32[144,128]{1,0:T(1,128)}', space=vmem, size = 0x12000, scoped, tag = 'internal scratch']
  %s0 = inlined_call_operand.vmem [shape: f32[16,1], index: 0, kind: input, shape index: {}]
  %s1 = inlined_call_operand.vmem [shape: f32[1,128], index: 1, kind: input, shape index: {}]
  %s2 = inlined_call_operand.hbm [shape: bf16[128,256], index: 2, kind: input, shape index: {}]
  %s3 = inlined_call_operand.hbm [shape: bf16[256,512], index: 3, kind: input, shape index: {}]
  %s4 = inlined_call_operand.hbm [shape: bf16[512,256], index: 4, kind: input, shape index: {}]
  %s5 = inlined_call_operand.hbm [shape: f32[256,128], index: 5, kind: input, shape index: {}]
  %s6 = inlined_call_operand.vmem [shape: f32[1,128], index: 6, kind: input, shape index: {}]
  %s7 = inlined_call_operand.vmem [shape: f32[1,256], index: 7, kind: input, shape index: {}]
  %s8 = inlined_call_operand.vmem [shape: f32[1,512], index: 8, kind: input, shape index: {}]
  %s9 = inlined_call_operand.vmem [shape: f32[1,256], index: 9, kind: input, shape index: {}]
  %s10 = inlined_call_operand.vmem [shape: f32[1,128], index: 10, kind: input, shape index: {}]
  %s11 = inlined_call_operand.hbm [shape: f32[16,128], index: 11, kind: output, shape index: {}]
  %s12 = sld [smem:[#allocation0]]
  $region70: #{tpu_custom_call.1} parent=0
    _
  %s14 = ssub.s32 1, %s12
  %s15 = scalar_select 0, %s14, %s12
  $region1: #{tpu_custom_call.1} parent=0
    #allocation2 [shape = 'u8[65536]{0}', space=vmem, size = 0x10000, scoped, tag = 'input window, operand 2, single buffered']
    #allocation3 [shape = 's32[1]{0}', space=sflag, size = 0x4, scoped, tag = 'scoped memory for tpu_custom_call.1']
    #allocation4 [shape = 's32[1]{0}', space=sflag, size = 0x4, scoped, tag = 'scoped memory for tpu_custom_call.1']
    #allocation5 [shape = 'u8[262144]{0}', space=vmem, size = 0x40000, scoped, tag = 'input window, operand 3, single buffered']
    #allocation6 [shape = 's32[1]{0}', space=sflag, size = 0x4, scoped, tag = 'scoped memory for tpu_custom_call.1']
    #allocation7 [shape = 'u8[262144]{0}', space=vmem, size = 0x40000, scoped, tag = 'input window, operand 4, single buffered']
    #allocation8 [shape = 'u8[131072]{0}', space=vmem, size = 0x20000, scoped, tag = 'input window, operand 5, single buffered']
    #allocation9 [shape = 's32[1]{0}', space=sflag, size = 0x4, scoped, tag = 'scoped memory for tpu_custom_call.1']
    #allocation10 [shape = 'u8[8192]{0}', space=vmem, size = 0x2000, scoped, tag = 'output window, operand 0, single buffered']
    %16 = vsyncpa [#allocation3], 0
    %17 = vsyncpa [#allocation6], 0
    %18 = vsyncpa [#allocation9], 0
    %19 = vsyncpa [#allocation4], 0
    // Predicated region
    $region2: #{tpu_custom_call.1} parent=1 // pred_check
      _
    $region3: #{tpu_custom_call.1} parent=1 // pred_check_branch
      %21 = sbr.rel (0) target = $region5
    $region4: #{tpu_custom_call.1} parent=1 // pred_region
      _
    $region5: #{tpu_custom_call.1} parent=1 // pred_fallthru
      _
    // Predicated region
    $region6: #{tpu_custom_call.1} parent=1 // pred_check
      _
    $region7: #{tpu_custom_call.1} parent=1 // pred_check_branch
      %23 = sbr.rel (0) target = $region9
    $region8: #{tpu_custom_call.1} parent=1 // pred_region
      _
    $region9: #{tpu_custom_call.1} parent=1 // pred_fallthru
      _
    // Predicated region
    $region10: #{tpu_custom_call.1} parent=1 // pred_check
      _
    $region11: #{tpu_custom_call.1} parent=1 // pred_check_branch
      %25 = sbr.rel (0) target = $region13
    $region12: #{tpu_custom_call.1} parent=1 // pred_region
      %s27 = ssub.s32 2048, 2048
      %28 = vsyncadd [#allocation3], %s27
      %s29 = sshll.u32 [#allocation2], 4
      %s30 = int_to_ptr.vmem [resolvable:$true] %s29
      %35 = dma.hbm_to_vmem [thread:$0]  %s2, 2048, %s30, [#allocation3], 128, 128, 8
    $region13: #{tpu_custom_call.1} parent=1 // pred_fallthru
      _
    // Predicated region
    $region14: #{tpu_custom_call.1} parent=1 // pred_check
      _
    $region15: #{tpu_custom_call.1} parent=1 // pred_check_branch
      %37 = sbr.rel (0) target = $region17
    $region16: #{tpu_custom_call.1} parent=1 // pred_region
      %s39 = ssub.s32 8192, 8192
      %40 = vsyncadd [#allocation6], %s39
      %s41 = sshll.u32 [#allocation5], 4
      %s42 = int_to_ptr.vmem [resolvable:$true] %s41
      %47 = dma.hbm_to_vmem [thread:$0]  %s3, 8192, %s42, [#allocation6], 256, 256, 16
    $region17: #{tpu_custom_call.1} parent=1 // pred_fallthru
      _
    // Predicated region
    $region18: #{tpu_custom_call.1} parent=1 // pred_check
      _
    $region19: #{tpu_custom_call.1} parent=1 // pred_check_branch
      %49 = sbr.rel (0) target = $region21
    $region20: #{tpu_custom_call.1} parent=1 // pred_region
      %s51 = ssub.s32 8192, 8192
      %52 = vsyncadd [#allocation6], %s51
      %s53 = sshll.u32 [#allocation7], 4
      %s54 = int_to_ptr.vmem [resolvable:$true] %s53
      %59 = dma.hbm_to_vmem [thread:$0]  %s4, 8192, %s54, [#allocation6], 128, 128, 8
    $region21: #{tpu_custom_call.1} parent=1 // pred_fallthru
      _
    // Predicated region
    $region22: #{tpu_custom_call.1} parent=1 // pred_check
      _
    $region23: #{tpu_custom_call.1} parent=1 // pred_check_branch
      %61 = sbr.rel (0) target = $region25
    $region24: #{tpu_custom_call.1} parent=1 // pred_region
      %s63 = ssub.s32 4096, 4096
      %64 = vsyncadd [#allocation9], %s63
      %s65 = sshll.u32 [#allocation8], 4
      %s66 = int_to_ptr.vmem [resolvable:$true] %s65
      %71 = dma.hbm_to_vmem [thread:$0]  %s5, 4096, %s66, [#allocation9], 128, 128, 8
    $region25: #{tpu_custom_call.1} parent=1 // pred_fallthru
      _
    // Predicated region
    $region26: #{tpu_custom_call.1} parent=1 // pred_check
      _
    $region27: #{tpu_custom_call.1} parent=1 // pred_check_branch
      %73 = sbr.rel (0) target = $region29
    $region28: #{tpu_custom_call.1} parent=1 // pred_region
      _
    $region29: #{tpu_custom_call.1} parent=1 // pred_fallthru
      _
    // Predicated region
    $region30: #{tpu_custom_call.1} parent=1 // pred_check
      _
    $region31: #{tpu_custom_call.1} parent=1 // pred_check_branch
      %75 = sbr.rel (0) target = $region33
    $region32: #{tpu_custom_call.1} parent=1 // pred_region
      _
    $region33: #{tpu_custom_call.1} parent=1 // pred_fallthru
      _
    // Predicated region
    $region34: #{tpu_custom_call.1} parent=1 // pred_check
      _
    $region35: #{tpu_custom_call.1} parent=1 // pred_check_branch
      %77 = sbr.rel (0) target = $region37
    $region36: #{tpu_custom_call.1} parent=1 // pred_region
      _
    $region37: #{tpu_custom_call.1} parent=1 // pred_fallthru
      _
    // Predicated region
    $region38: #{tpu_custom_call.1} parent=1 // pred_check
      _
    $region39: #{tpu_custom_call.1} parent=1 // pred_check_branch
      %79 = sbr.rel (0) target = $region41
    $region40: #{tpu_custom_call.1} parent=1 // pred_region
      _
    $region41: #{tpu_custom_call.1} parent=1 // pred_fallthru
      _
    // Predicated region
    $region42: #{tpu_custom_call.1} parent=1 // pred_check
      _
    $region43: #{tpu_custom_call.1} parent=1 // pred_check_branch
      %81 = sbr.rel (0) target = $region45
    $region44: #{tpu_custom_call.1} parent=1 // pred_region
      _
    $region45: #{tpu_custom_call.1} parent=1 // pred_fallthru
      _
    // Predicated region
    $region46: #{tpu_custom_call.1} parent=1 // pred_check
      _
    $region47: #{tpu_custom_call.1} parent=1 // pred_check_branch
      %83 = sbr.rel (0) target = $region49
    $region48: #{tpu_custom_call.1} parent=1 // pred_region
      %84 = dma.done [#allocation3], 2048
    $region49: #{tpu_custom_call.1} parent=1 // pred_fallthru
      _
    // Predicated region
    $region50: #{tpu_custom_call.1} parent=1 // pred_check
      _
    $region51: #{tpu_custom_call.1} parent=1 // pred_check_branch
      %86 = sbr.rel (0) target = $region53
    $region52: #{tpu_custom_call.1} parent=1 // pred_region
      %87 = dma.done [#allocation6], 8192
    $region53: #{tpu_custom_call.1} parent=1 // pred_fallthru
      _
    // Predicated region
    $region54: #{tpu_custom_call.1} parent=1 // pred_check
      _
    $region55: #{tpu_custom_call.1} parent=1 // pred_check_branch
      %89 = sbr.rel (0) target = $region57
    $region56: #{tpu_custom_call.1} parent=1 // pred_region
      %90 = dma.done [#allocation6], 8192
    $region57: #{tpu_custom_call.1} parent=1 // pred_fallthru
      _
    // Predicated region
    $region58: #{tpu_custom_call.1} parent=1 // pred_check
      _
    $region59: #{tpu_custom_call.1} parent=1 // pred_check_branch
      %92 = sbr.rel (0) target = $region61
    $region60: #{tpu_custom_call.1} parent=1 // pred_region
      %93 = dma.done [#allocation9], 4096
    $region61: #{tpu_custom_call.1} parent=1 // pred_fallthru
      _
    %v95 = vld [vmem:[%s0] sm:$0xff]
    %v96 = vld [vmem:[%s0 + $0x8] sm:$0xff]
    %v97 = vld [vmem:[%s1] sm:$0x1]
    %99 = vset.pattern.permute.xlu0 0
    %100 = vperm.xlu0 %99, %v95
    %v101 = vpop.permute.xlu0 %100
    %104 = vset.pattern.permute.xlu0 0
    %105 = vperm.xlu0 %104, %v96
    %v106 = vpop.permute.xlu0 %105
    %v109 = vlaneseq
    %v110 = vshrl.u32 %v109, 7
    %v111 = vsub.s32 0, %v110
    %v112 = vrot.slane %v97, %v111
    %v114 = vmul.f32 %v101, %v112
    %v115 = vmul.f32 %v106, %v112
    %v116 = vld [vmem:[%s6] sm:$0x1]
    %v118 = vlaneseq
    %v119 = vshrl.u32 %v118, 7
    %v120 = vsub.s32 0, %v119
    %v121 = vrot.slane %v116, %v120
    %v123 = vadd.f32 %v114, %v121
    %v124 = vadd.f32 %v115, %v121
    %v125 = vmax.f32 %v123, 0.0
    %v126 = vmax.f32 %v124, 0.0
    %v127 = vpack.c.bf16 %v126, %v125
    %v128 = vld [vmem:[#allocation2] sm:$0xff]
    %v129 = vld [vmem:[#allocation2 + $0x8] sm:$0xff]
    %v130 = vld [vmem:[#allocation2 + $0x10] sm:$0xff]
    %v131 = vld [vmem:[#allocation2 + $0x18] sm:$0xff]
    %v132 = vld [vmem:[#allocation2 + $0x20] sm:$0xff]
    %v133 = vld [vmem:[#allocation2 + $0x28] sm:$0xff]
    %v134 = vld [vmem:[#allocation2 + $0x30] sm:$0xff]
    %v135 = vld [vmem:[#allocation2 + $0x38] sm:$0xff]
    %v136 = vld [vmem:[#allocation2 + $0x40] sm:$0xff]
    %v137 = vld [vmem:[#allocation2 + $0x48] sm:$0xff]
    %v138 = vld [vmem:[#allocation2 + $0x50] sm:$0xff]
    %v139 = vld [vmem:[#allocation2 + $0x58] sm:$0xff]
    %v140 = vld [vmem:[#allocation2 + $0x60] sm:$0xff]
    %v141 = vld [vmem:[#allocation2 + $0x68] sm:$0xff]
    %v142 = vld [vmem:[#allocation2 + $0x70] sm:$0xff]
    %v143 = vld [vmem:[#allocation2 + $0x78] sm:$0xff]
    %v144 = vld [vmem:[%s7] sm:$0x3]
    %v146 = vlaneseq
    %v147 = vshrl.u32 %v146, 7
    %v148 = vsub.s32 0, %v147
    %v149 = vrot.slane %v144, %v148
    %v150 = vlaneseq
    %v151 = vshrl.u32 %v150, 7
    %v152 = vsub.s32 1, %v151
    %v153 = vrot.slane %v144, %v152
    %v172 = vunpack.c.l.b16 %v128
    %v173 = vunpack.c.h.b16 %v128
    %v174 = vunpack.c.l.b16 %v129
    %v175 = vunpack.c.h.b16 %v129
    %v176 = vunpack.c.l.b16 %v130
    %v177 = vunpack.c.h.b16 %v130
    %v178 = vunpack.c.l.b16 %v131
    %v179 = vunpack.c.h.b16 %v131
    %v180 = vunpack.c.l.b16 %v132
    %v181 = vunpack.c.h.b16 %v132
    %v182 = vunpack.c.l.b16 %v133
    %v183 = vunpack.c.h.b16 %v133
    %v184 = vunpack.c.l.b16 %v134
    %v185 = vunpack.c.h.b16 %v134
    %v186 = vunpack.c.l.b16 %v135
    %v187 = vunpack.c.h.b16 %v135
    %v188 = vunpack.c.l.b16 %v136
    %v189 = vunpack.c.h.b16 %v136
    %v190 = vunpack.c.l.b16 %v137
    %v191 = vunpack.c.h.b16 %v137
    %v192 = vunpack.c.l.b16 %v138
    %v193 = vunpack.c.h.b16 %v138
    %v194 = vunpack.c.l.b16 %v139
    %v195 = vunpack.c.h.b16 %v139
    %v196 = vunpack.c.l.b16 %v140
    %v197 = vunpack.c.h.b16 %v140
    %v198 = vunpack.c.l.b16 %v141
    %v199 = vunpack.c.h.b16 %v141
    %v200 = vunpack.c.l.b16 %v142
    %v201 = vunpack.c.h.b16 %v142
    %v202 = vunpack.c.l.b16 %v143
    %v203 = vunpack.c.h.b16 %v143
    %v204 = vpack.c.b16 %v174, %v172
    %v205 = vpack.c.b16 %v175, %v173
    %v206 = vpack.c.b16 %v178, %v176
    %v207 = vpack.c.b16 %v179, %v177
    %v208 = vpack.c.b16 %v182, %v180
    %v209 = vpack.c.b16 %v183, %v181
    %v210 = vpack.c.b16 %v186, %v184
    %v211 = vpack.c.b16 %v187, %v185
    %v212 = vpack.c.b16 %v190, %v188
    %v213 = vpack.c.b16 %v191, %v189
    %v214 = vpack.c.b16 %v194, %v192
    %v215 = vpack.c.b16 %v195, %v193
    %v216 = vpack.c.b16 %v198, %v196
    %v217 = vpack.c.b16 %v199, %v197
    %v218 = vpack.c.b16 %v202, %v200
    %v219 = vpack.c.b16 %v203, %v201
    %236 = vmatprep.subr.bf16.mxu0 %v219
    %237 = vmatpush1.bf16.msra.mxu0 %v218
    %238 = vmatprep.subr.bf16.mxu0 %v217
    %239 = vmatpush1.bf16.msra.mxu0 %v216
    %240 = vmatprep.subr.bf16.mxu0 %v215
    %241 = vmatpush1.bf16.msra.mxu0 %v214
    %242 = vmatprep.subr.bf16.mxu0 %v213
    %243 = vmatpush1.bf16.msra.mxu0 %v212
    %244 = vmatprep.subr.bf16.mxu0 %v211
    %245 = vmatpush1.bf16.msra.mxu0 %v210
    %246 = vmatprep.subr.bf16.mxu0 %v209
    %247 = vmatpush1.bf16.msra.mxu0 %v208
    %248 = vmatprep.subr.bf16.mxu0 %v207
    %249 = vmatpush1.bf16.msra.mxu0 %v206
    %250 = vmatprep.subr.bf16.mxu0 %v205
    %251 = vmatpush1.bf16.msra.mxu0 %v204
    %252 = vmatprep.subr.bf16.mxu0 0
    %253 = vmatpush2.bf16.msra.mxu0 0
    %254 = vmatprep.subr.bf16.mxu0 0
    %255 = vmatpush2.bf16.msra.mxu0 0
    %256 = vmatprep.subr.bf16.mxu0 0
    %257 = vmatpush2.bf16.msra.mxu0 0
    %258 = vmatprep.subr.bf16.mxu0 0
    %259 = vmatpush2.bf16.msra.mxu0 0
    %260 = vmatprep.subr.bf16.mxu0 0
    %261 = vmatpush2.bf16.msra.mxu0 0
    %262 = vmatprep.subr.bf16.mxu0 0
    %263 = vmatpush2.bf16.msra.mxu0 0
    %264 = vmatprep.subr.bf16.mxu0 0
    %265 = vmatpush2.bf16.msra.mxu0 0
    %266 = vmatprep.subr.bf16.mxu0 0
    %267 = vmatpush2.bf16.msra.mxu0 0
    %268 = vmatprep.mubr.bf16.mxu0 0
    %269 = vmatmul.mubr.bf16.gmra.mxu0 %v127
    %v270 = vpop.f32.mrf.mxu0
    %v271 = vadd.f32 %v149, %v270
    %v272 = vpop.f32.mrf.mxu0
    %v273 = vadd.f32 %v153, %v272
    %v274 = vpop.f32.mrf.mxu0
    %v275 = vadd.f32 %v149, %v274
    %v276 = vpop.f32.mrf.mxu0
    %v277 = vadd.f32 %v153, %v276
    %278 = vdwg.mxu0
    %v279 = vmax.f32 %v271, 0.0
    %v280 = vmax.f32 %v273, 0.0
    %v281 = vmax.f32 %v275, 0.0
    %v282 = vmax.f32 %v277, 0.0
    %v283 = vpack.c.bf16 %v281, %v279
    %v284 = vpack.c.bf16 %v282, %v280
    %v285 = vld [vmem:[#allocation5] sm:$0xff]
    %v286 = vld [vmem:[#allocation5 + $0x8] sm:$0xff]
    %v287 = vld [vmem:[#allocation5 + $0x10] sm:$0xff]
    %v288 = vld [vmem:[#allocation5 + $0x18] sm:$0xff]
    %v289 = vld [vmem:[#allocation5 + $0x20] sm:$0xff]
    %v290 = vld [vmem:[#allocation5 + $0x28] sm:$0xff]
    %v291 = vld [vmem:[#allocation5 + $0x30] sm:$0xff]
    %v292 = vld [vmem:[#allocation5 + $0x38] sm:$0xff]
    %v293 = vld [vmem:[#allocation5 + $0x40] sm:$0xff]
    %v294 = vld [vmem:[#allocation5 + $0x48] sm:$0xff]
    %v295 = vld [vmem:[#allocation5 + $0x50] sm:$0xff]
    %v296 = vld [vmem:[#allocation5 + $0x58] sm:$0xff]
    %v297 = vld [vmem:[#allocation5 + $0x60] sm:$0xff]
    %v298 = vld [vmem:[#allocation5 + $0x68] sm:$0xff]
    %v299 = vld [vmem:[#allocation5 + $0x70] sm:$0xff]
    %v300 = vld [vmem:[#allocation5 + $0x78] sm:$0xff]
    %v301 = vld [vmem:[#allocation5 + $0x80] sm:$0xff]
    %v302 = vld [vmem:[#allocation5 + $0x88] sm:$0xff]
    %v303 = vld [vmem:[#allocation5 + $0x90] sm:$0xff]
    %v304 = vld [vmem:[#allocation5 + $0x98] sm:$0xff]
    %v305 = vld [vmem:[#allocation5 + $0xa0] sm:$0xff]
    %v306 = vld [vmem:[#allocation5 + $0xa8] sm:$0xff]
    %v307 = vld [vmem:[#allocation5 + $0xb0] sm:$0xff]
    %v308 = vld [vmem:[#allocation5 + $0xb8] sm:$0xff]
    %v309 = vld [vmem:[#allocation5 + $0xc0] sm:$0xff]
    %v310 = vld [vmem:[#allocation5 + $0xc8] sm:$0xff]
    %v311 = vld [vmem:[#allocation5 + $0xd0] sm:$0xff]
    %v312 = vld [vmem:[#allocation5 + $0xd8] sm:$0xff]
    %v313 = vld [vmem:[#allocation5 + $0xe0] sm:$0xff]
    %v314 = vld [vmem:[#allocation5 + $0xe8] sm:$0xff]
    %v315 = vld [vmem:[#allocation5 + $0xf0] sm:$0xff]
    %v316 = vld [vmem:[#allocation5 + $0xf8] sm:$0xff]
    %v317 = vld [vmem:[#allocation5 + $0x100] sm:$0xff]
    %v318 = vld [vmem:[#allocation5 + $0x108] sm:$0xff]
    %v319 = vld [vmem:[#allocation5 + $0x110] sm:$0xff]
    %v320 = vld [vmem:[#allocation5 + $0x118] sm:$0xff]
    %v321 = vld [vmem:[#allocation5 + $0x120] sm:$0xff]
    %v322 = vld [vmem:[#allocation5 + $0x128] sm:$0xff]
    %v323 = vld [vmem:[#allocation5 + $0x130] sm:$0xff]
    %v324 = vld [vmem:[#allocation5 + $0x138] sm:$0xff]
    %v325 = vld [vmem:[#allocation5 + $0x140] sm:$0xff]
    %v326 = vld [vmem:[#allocation5 + $0x148] sm:$0xff]
    %v327 = vld [vmem:[#allocation5 + $0x150] sm:$0xff]
    %v328 = vld [vmem:[#allocation5 + $0x158] sm:$0xff]
    %v329 = vld [vmem:[#allocation5 + $0x160] sm:$0xff]
    %v330 = vld [vmem:[#allocation5 + $0x168] sm:$0xff]
    %v331 = vld [vmem:[#allocation5 + $0x170] sm:$0xff]
    %v332 = vld [vmem:[#allocation5 + $0x178] sm:$0xff]
    %v333 = vld [vmem:[#allocation5 + $0x180] sm:$0xff]
    %v334 = vld [vmem:[#allocation5 + $0x188] sm:$0xff]
    %v335 = vld [vmem:[#allocation5 + $0x190] sm:$0xff]
    %v336 = vld [vmem:[#allocation5 + $0x198] sm:$0xff]
    %v337 = vld [vmem:[#allocation5 + $0x1a0] sm:$0xff]
    %v338 = vld [vmem:[#allocation5 + $0x1a8] sm:$0xff]
    %v339 = vld [vmem:[#allocation5 + $0x1b0] sm:$0xff]
    %v340 = vld [vmem:[#allocation5 + $0x1b8] sm:$0xff]
    %v341 = vld [vmem:[#allocation5 + $0x1c0] sm:$0xff]
    %v342 = vld [vmem:[#allocation5 + $0x1c8] sm:$0xff]
    %v343 = vld [vmem:[#allocation5 + $0x1d0] sm:$0xff]
    %v344 = vld [vmem:[#allocation5 + $0x1d8] sm:$0xff]
    %v345 = vld [vmem:[#allocation5 + $0x1e0] sm:$0xff]
    %v346 = vld [vmem:[#allocation5 + $0x1e8] sm:$0xff]
    %v347 = vld [vmem:[#allocation5 + $0x1f0] sm:$0xff]
    %v348 = vld [vmem:[#allocation5 + $0x1f8] sm:$0xff]
    %v349 = vld [vmem:[%s8] sm:$0xf]
    %v351 = vlaneseq
    %v352 = vshrl.u32 %v351, 7
    %v353 = vsub.s32 0, %v352
    %v354 = vrot.slane %v349, %v353
    %v355 = vlaneseq
    %v356 = vshrl.u32 %v355, 7
    %v357 = vsub.s32 1, %v356
    %v358 = vrot.slane %v349, %v357
    %v359 = vlaneseq
    %v360 = vshrl.u32 %v359, 7
    %v361 = vsub.s32 2, %v360
    %v362 = vrot.slane %v349, %v361
    %v363 = vlaneseq
    %v364 = vshrl.u32 %v363, 7
    %v365 = vsub.s32 3, %v364
    %v366 = vrot.slane %v349, %v365
    %v435 = vunpack.c.l.b16 %v285
    %v436 = vunpack.c.h.b16 %v285
    %v437 = vunpack.c.l.b16 %v286
    %v438 = vunpack.c.h.b16 %v286
    %v439 = vunpack.c.l.b16 %v287
    %v440 = vunpack.c.h.b16 %v287
    %v441 = vunpack.c.l.b16 %v288
    %v442 = vunpack.c.h.b16 %v288
    %v443 = vunpack.c.l.b16 %v289
    %v444 = vunpack.c.h.b16 %v289
    %v445 = vunpack.c.l.b16 %v290
    %v446 = vunpack.c.h.b16 %v290
    %v447 = vunpack.c.l.b16 %v291
    %v448 = vunpack.c.h.b16 %v291
    %v449 = vunpack.c.l.b16 %v292
    %v450 = vunpack.c.h.b16 %v292
    %v451 = vunpack.c.l.b16 %v293
    %v452 = vunpack.c.h.b16 %v293
    %v453 = vunpack.c.l.b16 %v294
    %v454 = vunpack.c.h.b16 %v294
    %v455 = vunpack.c.l.b16 %v295
    %v456 = vunpack.c.h.b16 %v295
    %v457 = vunpack.c.l.b16 %v296
    %v458 = vunpack.c.h.b16 %v296
    %v459 = vunpack.c.l.b16 %v297
    %v460 = vunpack.c.h.b16 %v297
    %v461 = vunpack.c.l.b16 %v298
    %v462 = vunpack.c.h.b16 %v298
    %v463 = vunpack.c.l.b16 %v299
    %v464 = vunpack.c.h.b16 %v299
    %v465 = vunpack.c.l.b16 %v300
    %v466 = vunpack.c.h.b16 %v300
    %v467 = vunpack.c.l.b16 %v301
    %v468 = vunpack.c.h.b16 %v301
    %v469 = vunpack.c.l.b16 %v302
    %v470 = vunpack.c.h.b16 %v302
    %v471 = vunpack.c.l.b16 %v303
    %v472 = vunpack.c.h.b16 %v303
    %v473 = vunpack.c.l.b16 %v304
    %v474 = vunpack.c.h.b16 %v304
    %v475 = vunpack.c.l.b16 %v305
    %v476 = vunpack.c.h.b16 %v305
    %v477 = vunpack.c.l.b16 %v306
    %v478 = vunpack.c.h.b16 %v306
    %v479 = vunpack.c.l.b16 %v307
    %v480 = vunpack.c.h.b16 %v307
    %v481 = vunpack.c.l.b16 %v308
    %v482 = vunpack.c.h.b16 %v308
    %v483 = vunpack.c.l.b16 %v309
    %v484 = vunpack.c.h.b16 %v309
    %v485 = vunpack.c.l.b16 %v310
    %v486 = vunpack.c.h.b16 %v310
    %v487 = vunpack.c.l.b16 %v311
    %v488 = vunpack.c.h.b16 %v311
    %v489 = vunpack.c.l.b16 %v312
    %v490 = vunpack.c.h.b16 %v312
    %v491 = vunpack.c.l.b16 %v313
    %v492 = vunpack.c.h.b16 %v313
    %v493 = vunpack.c.l.b16 %v314
    %v494 = vunpack.c.h.b16 %v314
    %v495 = vunpack.c.l.b16 %v315
    %v496 = vunpack.c.h.b16 %v315
    %v497 = vunpack.c.l.b16 %v316
    %v498 = vunpack.c.h.b16 %v316
    %v499 = vunpack.c.l.b16 %v317
    %v500 = vunpack.c.h.b16 %v317
    %v501 = vunpack.c.l.b16 %v318
    %v502 = vunpack.c.h.b16 %v318
    %v503 = vunpack.c.l.b16 %v319
    %v504 = vunpack.c.h.b16 %v319
    %v505 = vunpack.c.l.b16 %v320
    %v506 = vunpack.c.h.b16 %v320
    %v507 = vunpack.c.l.b16 %v321
    %v508 = vunpack.c.h.b16 %v321
    %v509 = vunpack.c.l.b16 %v322
    %v510 = vunpack.c.h.b16 %v322
    %v511 = vunpack.c.l.b16 %v323
    %v512 = vunpack.c.h.b16 %v323
    %v513 = vunpack.c.l.b16 %v324
    %v514 = vunpack.c.h.b16 %v324
    %v515 = vunpack.c.l.b16 %v325
    %v516 = vunpack.c.h.b16 %v325
    %v517 = vunpack.c.l.b16 %v326
    %v518 = vunpack.c.h.b16 %v326
    %v519 = vunpack.c.l.b16 %v327
    %v520 = vunpack.c.h.b16 %v327
    %v521 = vunpack.c.l.b16 %v328
    %v522 = vunpack.c.h.b16 %v328
    %v523 = vunpack.c.l.b16 %v329
    %v524 = vunpack.c.h.b16 %v329
    %v525 = vunpack.c.l.b16 %v330
    %v526 = vunpack.c.h.b16 %v330
    %v527 = vunpack.c.l.b16 %v331
    %v528 = vunpack.c.h.b16 %v331
    %v529 = vunpack.c.l.b16 %v332
    %v530 = vunpack.c.h.b16 %v332
    %v531 = vunpack.c.l.b16 %v333
    %v532 = vunpack.c.h.b16 %v333
    %v533 = vunpack.c.l.b16 %v334
    %v534 = vunpack.c.h.b16 %v334
    %v535 = vunpack.c.l.b16 %v335
    %v536 = vunpack.c.h.b16 %v335
    %v537 = vunpack.c.l.b16 %v336
    %v538 = vunpack.c.h.b16 %v336
    %v539 = vunpack.c.l.b16 %v337
    %v540 = vunpack.c.h.b16 %v337
    %v541 = vunpack.c.l.b16 %v338
    %v542 = vunpack.c.h.b16 %v338
    %v543 = vunpack.c.l.b16 %v339
    %v544 = vunpack.c.h.b16 %v339
    %v545 = vunpack.c.l.b16 %v340
    %v546 = vunpack.c.h.b16 %v340
    %v547 = vunpack.c.l.b16 %v341
    %v548 = vunpack.c.h.b16 %v341
    %v549 = vunpack.c.l.b16 %v342
    %v550 = vunpack.c.h.b16 %v342
    %v551 = vunpack.c.l.b16 %v343
    %v552 = vunpack.c.h.b16 %v343
    %v553 = vunpack.c.l.b16 %v344
    %v554 = vunpack.c.h.b16 %v344
    %v555 = vunpack.c.l.b16 %v345
    %v556 = vunpack.c.h.b16 %v345
    %v557 = vunpack.c.l.b16 %v346
    %v558 = vunpack.c.h.b16 %v346
    %v559 = vunpack.c.l.b16 %v347
    %v560 = vunpack.c.h.b16 %v347
    %v561 = vunpack.c.l.b16 %v348
    %v562 = vunpack.c.h.b16 %v348
    %v563 = vpack.c.b16 %v439, %v435
    %v564 = vpack.c.b16 %v440, %v436
    %v565 = vpack.c.b16 %v441, %v437
    %v566 = vpack.c.b16 %v442, %v438
    %v567 = vpack.c.b16 %v447, %v443
    %v568 = vpack.c.b16 %v448, %v444
    %v569 = vpack.c.b16 %v449, %v445
    %v570 = vpack.c.b16 %v450, %v446
    %v571 = vpack.c.b16 %v455, %v451
    %v572 = vpack.c.b16 %v456, %v452
    %v573 = vpack.c.b16 %v457, %v453
    %v574 = vpack.c.b16 %v458, %v454
    %v575 = vpack.c.b16 %v463, %v459
    %v576 = vpack.c.b16 %v464, %v460
    %v577 = vpack.c.b16 %v465, %v461
    %v578 = vpack.c.b16 %v466, %v462
    %v579 = vpack.c.b16 %v471, %v467
    %v580 = vpack.c.b16 %v472, %v468
    %v581 = vpack.c.b16 %v473, %v469
    %v582 = vpack.c.b16 %v474, %v470
    %v583 = vpack.c.b16 %v479, %v475
    %v584 = vpack.c.b16 %v480, %v476
    %v585 = vpack.c.b16 %v481, %v477
    %v586 = vpack.c.b16 %v482, %v478
    %v587 = vpack.c.b16 %v487, %v483
    %v588 = vpack.c.b16 %v488, %v484
    %v589 = vpack.c.b16 %v489, %v485
    %v590 = vpack.c.b16 %v490, %v486
    %v591 = vpack.c.b16 %v495, %v491
    %v592 = vpack.c.b16 %v496, %v492
    %v593 = vpack.c.b16 %v497, %v493
    %v594 = vpack.c.b16 %v498, %v494
    %v595 = vpack.c.b16 %v503, %v499
    %v596 = vpack.c.b16 %v504, %v500
    %v597 = vpack.c.b16 %v505, %v501
    %v598 = vpack.c.b16 %v506, %v502
    %v599 = vpack.c.b16 %v511, %v507
    %v600 = vpack.c.b16 %v512, %v508
    %v601 = vpack.c.b16 %v513, %v509
    %v602 = vpack.c.b16 %v514, %v510
    %v603 = vpack.c.b16 %v519, %v515
    %v604 = vpack.c.b16 %v520, %v516
    %v605 = vpack.c.b16 %v521, %v517
    %v606 = vpack.c.b16 %v522, %v518
    %v607 = vpack.c.b16 %v527, %v523
    %v608 = vpack.c.b16 %v528, %v524
    %v609 = vpack.c.b16 %v529, %v525
    %v610 = vpack.c.b16 %v530, %v526
    %v611 = vpack.c.b16 %v535, %v531
    %v612 = vpack.c.b16 %v536, %v532
    %v613 = vpack.c.b16 %v537, %v533
    %v614 = vpack.c.b16 %v538, %v534
    %v615 = vpack.c.b16 %v543, %v539
    %v616 = vpack.c.b16 %v544, %v540
    %v617 = vpack.c.b16 %v545, %v541
    %v618 = vpack.c.b16 %v546, %v542
    %v619 = vpack.c.b16 %v551, %v547
    %v620 = vpack.c.b16 %v552, %v548
    %v621 = vpack.c.b16 %v553, %v549
    %v622 = vpack.c.b16 %v554, %v550
    %v623 = vpack.c.b16 %v559, %v555
    %v624 = vpack.c.b16 %v560, %v556
    %v625 = vpack.c.b16 %v561, %v557
    %v626 = vpack.c.b16 %v562, %v558
    %691 = vmatprep.subr.bf16.mxu0 %v592
    %692 = vmatpush1.bf16.msra.mxu0 %v591
    %693 = vmatprep.subr.bf16.mxu0 %v588
    %694 = vmatpush1.bf16.msra.mxu0 %v587
    %695 = vmatprep.subr.bf16.mxu0 %v584
    %696 = vmatpush1.bf16.msra.mxu0 %v583
    %697 = vmatprep.subr.bf16.mxu0 %v580
    %698 = vmatpush1.bf16.msra.mxu0 %v579
    %699 = vmatprep.subr.bf16.mxu0 %v576
    %700 = vmatpush1.bf16.msra.mxu0 %v575
    %701 = vmatprep.subr.bf16.mxu0 %v572
    %702 = vmatpush1.bf16.msra.mxu0 %v571
    %703 = vmatprep.subr.bf16.mxu0 %v568
    %704 = vmatpush1.bf16.msra.mxu0 %v567
    %705 = vmatprep.subr.bf16.mxu0 %v564
    %706 = vmatpush1.bf16.msra.mxu0 %v563
    %707 = vmatprep.subr.bf16.mxu0 %v624
    %708 = vmatpush2.bf16.msra.mxu0 %v623
    %709 = vmatprep.subr.bf16.mxu0 %v620
    %710 = vmatpush2.bf16.msra.mxu0 %v619
    %711 = vmatprep.subr.bf16.mxu0 %v616
    %712 = vmatpush2.bf16.msra.mxu0 %v615
    %713 = vmatprep.subr.bf16.mxu0 %v612
    %714 = vmatpush2.bf16.msra.mxu0 %v611
    %715 = vmatprep.subr.bf16.mxu0 %v608
    %716 = vmatpush2.bf16.msra.mxu0 %v607
    %717 = vmatprep.subr.bf16.mxu0 %v604
    %718 = vmatpush2.bf16.msra.mxu0 %v603
    %719 = vmatprep.subr.bf16.mxu0 %v600
    %720 = vmatpush2.bf16.msra.mxu0 %v599
    %721 = vmatprep.subr.bf16.mxu0 %v596
    %722 = vmatpush2.bf16.msra.mxu0 %v595
    %723 = vmatprep.mubr.bf16.mxu0 %v284
    %724 = vmatmul.mubr.bf16.gmra.mxu0 %v283
    %v725 = vpop.f32.mrf.mxu0
    %v726 = vadd.f32 %v354, %v725
    %v727 = vpop.f32.mrf.mxu0
    %v728 = vadd.f32 %v358, %v727
    %v729 = vpop.f32.mrf.mxu0
    %v730 = vadd.f32 %v354, %v729
    %v731 = vpop.f32.mrf.mxu0
    %v732 = vadd.f32 %v358, %v731
    %733 = vdwg.mxu0
    %734 = vmatprep.subr.bf16.mxu0 %v594
    %735 = vmatpush1.bf16.msra.mxu0 %v593
    %736 = vmatprep.subr.bf16.mxu0 %v590
    %737 = vmatpush1.bf16.msra.mxu0 %v589
    %738 = vmatprep.subr.bf16.mxu0 %v586
    %739 = vmatpush1.bf16.msra.mxu0 %v585
    %740 = vmatprep.subr.bf16.mxu0 %v582
    %741 = vmatpush1.bf16.msra.mxu0 %v581
    %742 = vmatprep.subr.bf16.mxu0 %v578
    %743 = vmatpush1.bf16.msra.mxu0 %v577
    %744 = vmatprep.subr.bf16.mxu0 %v574
    %745 = vmatpush1.bf16.msra.mxu0 %v573
    %746 = vmatprep.subr.bf16.mxu0 %v570
    %747 = vmatpush1.bf16.msra.mxu0 %v569
    %748 = vmatprep.subr.bf16.mxu0 %v566
    %749 = vmatpush1.bf16.msra.mxu0 %v565
    %750 = vmatprep.subr.bf16.mxu0 %v626
    %751 = vmatpush2.bf16.msra.mxu0 %v625
    %752 = vmatprep.subr.bf16.mxu0 %v622
    %753 = vmatpush2.bf16.msra.mxu0 %v621
    %754 = vmatprep.subr.bf16.mxu0 %v618
    %755 = vmatpush2.bf16.msra.mxu0 %v617
    %756 = vmatprep.subr.bf16.mxu0 %v614
    %757 = vmatpush2.bf16.msra.mxu0 %v613
    %758 = vmatprep.subr.bf16.mxu0 %v610
    %759 = vmatpush2.bf16.msra.mxu0 %v609
    %760 = vmatprep.subr.bf16.mxu0 %v606
    %761 = vmatpush2.bf16.msra.mxu0 %v605
    %762 = vmatprep.subr.bf16.mxu0 %v602
    %763 = vmatpush2.bf16.msra.mxu0 %v601
    %764 = vmatprep.subr.bf16.mxu0 %v598
    %765 = vmatpush2.bf16.msra.mxu0 %v597
    %766 = vmatprep.mubr.bf16.mxu0 %v284
    %767 = vmatmul.mubr.bf16.gmra.mxu0 %v283
    %v768 = vpop.f32.mrf.mxu0
    %v769 = vadd.f32 %v362, %v768
    %v770 = vpop.f32.mrf.mxu0
    %v771 = vadd.f32 %v366, %v770
    %v772 = vpop.f32.mrf.mxu0
    %v773 = vadd.f32 %v362, %v772
    %v774 = vpop.f32.mrf.mxu0
    %v775 = vadd.f32 %v366, %v774
    %776 = vdwg.mxu0
    %v777 = vmax.f32 %v726, 0.0
    %v778 = vmax.f32 %v728, 0.0
    %v779 = vmax.f32 %v769, 0.0
    %v780 = vmax.f32 %v771, 0.0
    %v781 = vmax.f32 %v730, 0.0
    %v782 = vmax.f32 %v732, 0.0
    %v783 = vmax.f32 %v773, 0.0
    %v784 = vmax.f32 %v775, 0.0
    %v785 = vpack.c.bf16 %v781, %v777
    %v786 = vpack.c.bf16 %v782, %v778
    %v787 = vpack.c.bf16 %v783, %v779
    %v788 = vpack.c.bf16 %v784, %v780
    %v789 = vld [vmem:[#allocation7] sm:$0xff]
    %v790 = vld [vmem:[#allocation7 + $0x8] sm:$0xff]
    %v791 = vld [vmem:[#allocation7 + $0x10] sm:$0xff]
    %v792 = vld [vmem:[#allocation7 + $0x18] sm:$0xff]
    %v793 = vld [vmem:[#allocation7 + $0x20] sm:$0xff]
    %v794 = vld [vmem:[#allocation7 + $0x28] sm:$0xff]
    %v795 = vld [vmem:[#allocation7 + $0x30] sm:$0xff]
    %v796 = vld [vmem:[#allocation7 + $0x38] sm:$0xff]
    %v797 = vld [vmem:[#allocation7 + $0x40] sm:$0xff]
    %v798 = vld [vmem:[#allocation7 + $0x48] sm:$0xff]
    %v799 = vld [vmem:[#allocation7 + $0x50] sm:$0xff]
    %v800 = vld [vmem:[#allocation7 + $0x58] sm:$0xff]
    %v801 = vld [vmem:[#allocation7 + $0x60] sm:$0xff]
    %v802 = vld [vmem:[#allocation7 + $0x68] sm:$0xff]
    %v803 = vld [vmem:[#allocation7 + $0x70] sm:$0xff]
    %v804 = vld [vmem:[#allocation7 + $0x78] sm:$0xff]
    %v805 = vld [vmem:[#allocation7 + $0x80] sm:$0xff]
    %v806 = vld [vmem:[#allocation7 + $0x88] sm:$0xff]
    %v807 = vld [vmem:[#allocation7 + $0x90] sm:$0xff]
    %v808 = vld [vmem:[#allocation7 + $0x98] sm:$0xff]
    %v809 = vld [vmem:[#allocation7 + $0xa0] sm:$0xff]
    %v810 = vld [vmem:[#allocation7 + $0xa8] sm:$0xff]
    %v811 = vld [vmem:[#allocation7 + $0xb0] sm:$0xff]
    %v812 = vld [vmem:[#allocation7 + $0xb8] sm:$0xff]
    %v813 = vld [vmem:[#allocation7 + $0xc0] sm:$0xff]
    %v814 = vld [vmem:[#allocation7 + $0xc8] sm:$0xff]
    %v815 = vld [vmem:[#allocation7 + $0xd0] sm:$0xff]
    %v816 = vld [vmem:[#allocation7 + $0xd8] sm:$0xff]
    %v817 = vld [vmem:[#allocation7 + $0xe0] sm:$0xff]
    %v818 = vld [vmem:[#allocation7 + $0xe8] sm:$0xff]
    %v819 = vld [vmem:[#allocation7 + $0xf0] sm:$0xff]
    %v820 = vld [vmem:[#allocation7 + $0xf8] sm:$0xff]
    %v821 = vld [vmem:[#allocation7 + $0x100] sm:$0xff]
    %v822 = vld [vmem:[#allocation7 + $0x108] sm:$0xff]
    %v823 = vld [vmem:[#allocation7 + $0x110] sm:$0xff]
    %v824 = vld [vmem:[#allocation7 + $0x118] sm:$0xff]
    %v825 = vld [vmem:[#allocation7 + $0x120] sm:$0xff]
    %v826 = vld [vmem:[#allocation7 + $0x128] sm:$0xff]
    %v827 = vld [vmem:[#allocation7 + $0x130] sm:$0xff]
    %v828 = vld [vmem:[#allocation7 + $0x138] sm:$0xff]
    %v829 = vld [vmem:[#allocation7 + $0x140] sm:$0xff]
    %v830 = vld [vmem:[#allocation7 + $0x148] sm:$0xff]
    %v831 = vld [vmem:[#allocation7 + $0x150] sm:$0xff]
    %v832 = vld [vmem:[#allocation7 + $0x158] sm:$0xff]
    %v833 = vld [vmem:[#allocation7 + $0x160] sm:$0xff]
    %v834 = vld [vmem:[#allocation7 + $0x168] sm:$0xff]
    %v835 = vld [vmem:[#allocation7 + $0x170] sm:$0xff]
    %v836 = vld [vmem:[#allocation7 + $0x178] sm:$0xff]
    %v837 = vld [vmem:[#allocation7 + $0x180] sm:$0xff]
    %v838 = vld [vmem:[#allocation7 + $0x188] sm:$0xff]
    %v839 = vld [vmem:[#allocation7 + $0x190] sm:$0xff]
    %v840 = vld [vmem:[#allocation7 + $0x198] sm:$0xff]
    %v841 = vld [vmem:[#allocation7 + $0x1a0] sm:$0xff]
    %v842 = vld [vmem:[#allocation7 + $0x1a8] sm:$0xff]
    %v843 = vld [vmem:[#allocation7 + $0x1b0] sm:$0xff]
    %v844 = vld [vmem:[#allocation7 + $0x1b8] sm:$0xff]
    %v845 = vld [vmem:[#allocation7 + $0x1c0] sm:$0xff]
    %v846 = vld [vmem:[#allocation7 + $0x1c8] sm:$0xff]
    %v847 = vld [vmem:[#allocation7 + $0x1d0] sm:$0xff]
    %v848 = vld [vmem:[#allocation7 + $0x1d8] sm:$0xff]
    %v849 = vld [vmem:[#allocation7 + $0x1e0] sm:$0xff]
    %v850 = vld [vmem:[#allocation7 + $0x1e8] sm:$0xff]
    %v851 = vld [vmem:[#allocation7 + $0x1f0] sm:$0xff]
    %v852 = vld [vmem:[#allocation7 + $0x1f8] sm:$0xff]
    %v853 = vld [vmem:[%s9] sm:$0x3]
    %v855 = vlaneseq
    %v856 = vshrl.u32 %v855, 7
    %v857 = vsub.s32 0, %v856
    %v858 = vrot.slane %v853, %v857
    %v859 = vlaneseq
    %v860 = vshrl.u32 %v859, 7
    %v861 = vsub.s32 1, %v860
    %v862 = vrot.slane %v853, %v861
    %v929 = vunpack.c.l.b16 %v789
    %v930 = vunpack.c.h.b16 %v789
    %v931 = vunpack.c.l.b16 %v790
    %v932 = vunpack.c.h.b16 %v790
    %v933 = vunpack.c.l.b16 %v791
    %v934 = vunpack.c.h.b16 %v791
    %v935 = vunpack.c.l.b16 %v792
    %v936 = vunpack.c.h.b16 %v792
    %v937 = vunpack.c.l.b16 %v793
    %v938 = vunpack.c.h.b16 %v793
    %v939 = vunpack.c.l.b16 %v794
    %v940 = vunpack.c.h.b16 %v794
    %v941 = vunpack.c.l.b16 %v795
    %v942 = vunpack.c.h.b16 %v795
    %v943 = vunpack.c.l.b16 %v796
    %v944 = vunpack.c.h.b16 %v796
    %v945 = vunpack.c.l.b16 %v797
    %v946 = vunpack.c.h.b16 %v797
    %v947 = vunpack.c.l.b16 %v798
    %v948 = vunpack.c.h.b16 %v798
    %v949 = vunpack.c.l.b16 %v799
    %v950 = vunpack.c.h.b16 %v799
    %v951 = vunpack.c.l.b16 %v800
    %v952 = vunpack.c.h.b16 %v800
    %v953 = vunpack.c.l.b16 %v801
    %v954 = vunpack.c.h.b16 %v801
    %v955 = vunpack.c.l.b16 %v802
    %v956 = vunpack.c.h.b16 %v802
    %v957 = vunpack.c.l.b16 %v803
    %v958 = vunpack.c.h.b16 %v803
    %v959 = vunpack.c.l.b16 %v804
    %v960 = vunpack.c.h.b16 %v804
    %v961 = vunpack.c.l.b16 %v805
    %v962 = vunpack.c.h.b16 %v805
    %v963 = vunpack.c.l.b16 %v806
    %v964 = vunpack.c.h.b16 %v806
    %v965 = vunpack.c.l.b16 %v807
    %v966 = vunpack.c.h.b16 %v807
    %v967 = vunpack.c.l.b16 %v808
    %v968 = vunpack.c.h.b16 %v808
    %v969 = vunpack.c.l.b16 %v809
    %v970 = vunpack.c.h.b16 %v809
    %v971 = vunpack.c.l.b16 %v810
    %v972 = vunpack.c.h.b16 %v810
    %v973 = vunpack.c.l.b16 %v811
    %v974 = vunpack.c.h.b16 %v811
    %v975 = vunpack.c.l.b16 %v812
    %v976 = vunpack.c.h.b16 %v812
    %v977 = vunpack.c.l.b16 %v813
    %v978 = vunpack.c.h.b16 %v813
    %v979 = vunpack.c.l.b16 %v814
    %v980 = vunpack.c.h.b16 %v814
    %v981 = vunpack.c.l.b16 %v815
    %v982 = vunpack.c.h.b16 %v815
    %v983 = vunpack.c.l.b16 %v816
    %v984 = vunpack.c.h.b16 %v816
    %v985 = vunpack.c.l.b16 %v817
    %v986 = vunpack.c.h.b16 %v817
    %v987 = vunpack.c.l.b16 %v818
    %v988 = vunpack.c.h.b16 %v818
    %v989 = vunpack.c.l.b16 %v819
    %v990 = vunpack.c.h.b16 %v819
    %v991 = vunpack.c.l.b16 %v820
    %v992 = vunpack.c.h.b16 %v820
    %v993 = vunpack.c.l.b16 %v821
    %v994 = vunpack.c.h.b16 %v821
    %v995 = vunpack.c.l.b16 %v822
    %v996 = vunpack.c.h.b16 %v822
    %v997 = vunpack.c.l.b16 %v823
    %v998 = vunpack.c.h.b16 %v823
    %v999 = vunpack.c.l.b16 %v824
    %v1000 = vunpack.c.h.b16 %v824
    %v1001 = vunpack.c.l.b16 %v825
    %v1002 = vunpack.c.h.b16 %v825
    %v1003 = vunpack.c.l.b16 %v826
    %v1004 = vunpack.c.h.b16 %v826
    %v1005 = vunpack.c.l.b16 %v827
    %v1006 = vunpack.c.h.b16 %v827
    %v1007 = vunpack.c.l.b16 %v828
    %v1008 = vunpack.c.h.b16 %v828
    %v1009 = vunpack.c.l.b16 %v829
    %v1010 = vunpack.c.h.b16 %v829
    %v1011 = vunpack.c.l.b16 %v830
    %v1012 = vunpack.c.h.b16 %v830
    %v1013 = vunpack.c.l.b16 %v831
    %v1014 = vunpack.c.h.b16 %v831
    %v1015 = vunpack.c.l.b16 %v832
    %v1016 = vunpack.c.h.b16 %v832
    %v1017 = vunpack.c.l.b16 %v833
    %v1018 = vunpack.c.h.b16 %v833
    %v1019 = vunpack.c.l.b16 %v834
    %v1020 = vunpack.c.h.b16 %v834
    %v1021 = vunpack.c.l.b16 %v835
    %v1022 = vunpack.c.h.b16 %v835
    %v1023 = vunpack.c.l.b16 %v836
    %v1024 = vunpack.c.h.b16 %v836
    %v1025 = vunpack.c.l.b16 %v837
    %v1026 = vunpack.c.h.b16 %v837
    %v1027 = vunpack.c.l.b16 %v838
    %v1028 = vunpack.c.h.b16 %v838
    %v1029 = vunpack.c.l.b16 %v839
    %v1030 = vunpack.c.h.b16 %v839
    %v1031 = vunpack.c.l.b16 %v840
    %v1032 = vunpack.c.h.b16 %v840
    %v1033 = vunpack.c.l.b16 %v841
    %v1034 = vunpack.c.h.b16 %v841
    %v1035 = vunpack.c.l.b16 %v842
    %v1036 = vunpack.c.h.b16 %v842
    %v1037 = vunpack.c.l.b16 %v843
    %v1038 = vunpack.c.h.b16 %v843
    %v1039 = vunpack.c.l.b16 %v844
    %v1040 = vunpack.c.h.b16 %v844
    %v1041 = vunpack.c.l.b16 %v845
    %v1042 = vunpack.c.h.b16 %v845
    %v1043 = vunpack.c.l.b16 %v846
    %v1044 = vunpack.c.h.b16 %v846
    %v1045 = vunpack.c.l.b16 %v847
    %v1046 = vunpack.c.h.b16 %v847
    %v1047 = vunpack.c.l.b16 %v848
    %v1048 = vunpack.c.h.b16 %v848
    %v1049 = vunpack.c.l.b16 %v849
    %v1050 = vunpack.c.h.b16 %v849
    %v1051 = vunpack.c.l.b16 %v850
    %v1052 = vunpack.c.h.b16 %v850
    %v1053 = vunpack.c.l.b16 %v851
    %v1054 = vunpack.c.h.b16 %v851
    %v1055 = vunpack.c.l.b16 %v852
    %v1056 = vunpack.c.h.b16 %v852
    %v1057 = vpack.c.b16 %v931, %v929
    %v1058 = vpack.c.b16 %v932, %v930
    %v1059 = vpack.c.b16 %v935, %v933
    %v1060 = vpack.c.b16 %v936, %v934
    %v1061 = vpack.c.b16 %v939, %v937
    %v1062 = vpack.c.b16 %v940, %v938
    %v1063 = vpack.c.b16 %v943, %v941
    %v1064 = vpack.c.b16 %v944, %v942
    %v1065 = vpack.c.b16 %v947, %v945
    %v1066 = vpack.c.b16 %v948, %v946
    %v1067 = vpack.c.b16 %v951, %v949
    %v1068 = vpack.c.b16 %v952, %v950
    %v1069 = vpack.c.b16 %v955, %v953
    %v1070 = vpack.c.b16 %v956, %v954
    %v1071 = vpack.c.b16 %v959, %v957
    %v1072 = vpack.c.b16 %v960, %v958
    %v1073 = vpack.c.b16 %v963, %v961
    %v1074 = vpack.c.b16 %v964, %v962
    %v1075 = vpack.c.b16 %v967, %v965
    %v1076 = vpack.c.b16 %v968, %v966
    %v1077 = vpack.c.b16 %v971, %v969
    %v1078 = vpack.c.b16 %v972, %v970
    %v1079 = vpack.c.b16 %v975, %v973
    %v1080 = vpack.c.b16 %v976, %v974
    %v1081 = vpack.c.b16 %v979, %v977
    %v1082 = vpack.c.b16 %v980, %v978
    %v1083 = vpack.c.b16 %v983, %v981
    %v1084 = vpack.c.b16 %v984, %v982
    %v1085 = vpack.c.b16 %v987, %v985
    %v1086 = vpack.c.b16 %v988, %v986
    %v1087 = vpack.c.b16 %v991, %v989
    %v1088 = vpack.c.b16 %v992, %v990
    %v1089 = vpack.c.b16 %v995, %v993
    %v1090 = vpack.c.b16 %v996, %v994
    %v1091 = vpack.c.b16 %v999, %v997
    %v1092 = vpack.c.b16 %v1000, %v998
    %v1093 = vpack.c.b16 %v1003, %v1001
    %v1094 = vpack.c.b16 %v1004, %v1002
    %v1095 = vpack.c.b16 %v1007, %v1005
    %v1096 = vpack.c.b16 %v1008, %v1006
    %v1097 = vpack.c.b16 %v1011, %v1009
    %v1098 = vpack.c.b16 %v1012, %v1010
    %v1099 = vpack.c.b16 %v1015, %v1013
    %v1100 = vpack.c.b16 %v1016, %v1014
    %v1101 = vpack.c.b16 %v1019, %v1017
    %v1102 = vpack.c.b16 %v1020, %v1018
    %v1103 = vpack.c.b16 %v1023, %v1021
    %v1104 = vpack.c.b16 %v1024, %v1022
    %v1105 = vpack.c.b16 %v1027, %v1025
    %v1106 = vpack.c.b16 %v1028, %v1026
    %v1107 = vpack.c.b16 %v1031, %v1029
    %v1108 = vpack.c.b16 %v1032, %v1030
    %v1109 = vpack.c.b16 %v1035, %v1033
    %v1110 = vpack.c.b16 %v1036, %v1034
    %v1111 = vpack.c.b16 %v1039, %v1037
    %v1112 = vpack.c.b16 %v1040, %v1038
    %v1113 = vpack.c.b16 %v1043, %v1041
    %v1114 = vpack.c.b16 %v1044, %v1042
    %v1115 = vpack.c.b16 %v1047, %v1045
    %v1116 = vpack.c.b16 %v1048, %v1046
    %v1117 = vpack.c.b16 %v1051, %v1049
    %v1118 = vpack.c.b16 %v1052, %v1050
    %v1119 = vpack.c.b16 %v1055, %v1053
    %v1120 = vpack.c.b16 %v1056, %v1054
    %1185 = vmatprep.subr.bf16.mxu0 %v1072
    %1186 = vmatpush1.bf16.msra.mxu0 %v1071
    %1187 = vmatprep.subr.bf16.mxu0 %v1070
    %1188 = vmatpush1.bf16.msra.mxu0 %v1069
    %1189 = vmatprep.subr.bf16.mxu0 %v1068
    %1190 = vmatpush1.bf16.msra.mxu0 %v1067
    %1191 = vmatprep.subr.bf16.mxu0 %v1066
    %1192 = vmatpush1.bf16.msra.mxu0 %v1065
    %1193 = vmatprep.subr.bf16.mxu0 %v1064
    %1194 = vmatpush1.bf16.msra.mxu0 %v1063
    %1195 = vmatprep.subr.bf16.mxu0 %v1062
    %1196 = vmatpush1.bf16.msra.mxu0 %v1061
    %1197 = vmatprep.subr.bf16.mxu0 %v1060
    %1198 = vmatpush1.bf16.msra.mxu0 %v1059
    %1199 = vmatprep.subr.bf16.mxu0 %v1058
    %1200 = vmatpush1.bf16.msra.mxu0 %v1057
    %1201 = vmatprep.subr.bf16.mxu0 %v1088
    %1202 = vmatpush2.bf16.msra.mxu0 %v1087
    %1203 = vmatprep.subr.bf16.mxu0 %v1086
    %1204 = vmatpush2.bf16.msra.mxu0 %v1085
    %1205 = vmatprep.subr.bf16.mxu0 %v1084
    %1206 = vmatpush2.bf16.msra.mxu0 %v1083
    %1207 = vmatprep.subr.bf16.mxu0 %v1082
    %1208 = vmatpush2.bf16.msra.mxu0 %v1081
    %1209 = vmatprep.subr.bf16.mxu0 %v1080
    %1210 = vmatpush2.bf16.msra.mxu0 %v1079
    %1211 = vmatprep.subr.bf16.mxu0 %v1078
    %1212 = vmatpush2.bf16.msra.mxu0 %v1077
    %1213 = vmatprep.subr.bf16.mxu0 %v1076
    %1214 = vmatpush2.bf16.msra.mxu0 %v1075
    %1215 = vmatprep.subr.bf16.mxu0 %v1074
    %1216 = vmatpush2.bf16.msra.mxu0 %v1073
    %1217 = vmatprep.mubr.bf16.mxu0 %v786
    %1218 = vmatmul.mubr.bf16.gmra.mxu0 %v785
    %v1219 = vpop.f32.mrf.mxu0
    %v1220 = vadd.f32 %v858, %v1219
    %v1221 = vpop.f32.mrf.mxu0
    %v1222 = vadd.f32 %v862, %v1221
    %v1223 = vpop.f32.mrf.mxu0
    %v1224 = vadd.f32 %v858, %v1223
    %v1225 = vpop.f32.mrf.mxu0
    %v1226 = vadd.f32 %v862, %v1225
    %1227 = vdwg.mxu0
    %1228 = vmatprep.subr.bf16.mxu0 %v1104
    %1229 = vmatpush1.bf16.msra.mxu0 %v1103
    %1230 = vmatprep.subr.bf16.mxu0 %v1102
    %1231 = vmatpush1.bf16.msra.mxu0 %v1101
    %1232 = vmatprep.subr.bf16.mxu0 %v1100
    %1233 = vmatpush1.bf16.msra.mxu0 %v1099
    %1234 = vmatprep.subr.bf16.mxu0 %v1098
    %1235 = vmatpush1.bf16.msra.mxu0 %v1097
    %1236 = vmatprep.subr.bf16.mxu0 %v1096
    %1237 = vmatpush1.bf16.msra.mxu0 %v1095
    %1238 = vmatprep.subr.bf16.mxu0 %v1094
    %1239 = vmatpush1.bf16.msra.mxu0 %v1093
    %1240 = vmatprep.subr.bf16.mxu0 %v1092
    %1241 = vmatpush1.bf16.msra.mxu0 %v1091
    %1242 = vmatprep.subr.bf16.mxu0 %v1090
    %1243 = vmatpush1.bf16.msra.mxu0 %v1089
    %1244 = vmatprep.subr.bf16.mxu0 %v1120
    %1245 = vmatpush2.bf16.msra.mxu0 %v1119
    %1246 = vmatprep.subr.bf16.mxu0 %v1118
    %1247 = vmatpush2.bf16.msra.mxu0 %v1117
    %1248 = vmatprep.subr.bf16.mxu0 %v1116
    %1249 = vmatpush2.bf16.msra.mxu0 %v1115
    %1250 = vmatprep.subr.bf16.mxu0 %v1114
    %1251 = vmatpush2.bf16.msra.mxu0 %v1113
    %1252 = vmatprep.subr.bf16.mxu0 %v1112
    %1253 = vmatpush2.bf16.msra.mxu0 %v1111
    %1254 = vmatprep.subr.bf16.mxu0 %v1110
    %1255 = vmatpush2.bf16.msra.mxu0 %v1109
    %1256 = vmatprep.subr.bf16.mxu0 %v1108
    %1257 = vmatpush2.bf16.msra.mxu0 %v1107
    %1258 = vmatprep.subr.bf16.mxu0 %v1106
    %1259 = vmatpush2.bf16.msra.mxu0 %v1105
    %1260 = vmatprep.mubr.bf16.mxu0 %v788
    %1261 = vmatmul.mubr.bf16.gmra.mxu0 %v787
    %v1262 = vpop.f32.mrf.mxu0
    %v1263 = vadd.f32 %v1220, %v1262
    %v1264 = vpop.f32.mrf.mxu0
    %v1265 = vadd.f32 %v1222, %v1264
    %v1266 = vpop.f32.mrf.mxu0
    %v1267 = vadd.f32 %v1224, %v1266
    %v1268 = vpop.f32.mrf.mxu0
    %v1269 = vadd.f32 %v1226, %v1268
    %1270 = vdwg.mxu0
    %v1271 = vmax.f32 %v1263, 0.0
    %v1272 = vmax.f32 %v1265, 0.0
    %v1273 = vmax.f32 %v1267, 0.0
    %v1274 = vmax.f32 %v1269, 0.0
    %v1275 = vld [vmem:[#allocation8] sm:$0xff]
    %v1276 = vld [vmem:[#allocation8 + $0x8] sm:$0xff]
    %v1277 = vld [vmem:[#allocation8 + $0x10] sm:$0xff]
    %v1278 = vld [vmem:[#allocation8 + $0x18] sm:$0xff]
    %v1279 = vld [vmem:[#allocation8 + $0x20] sm:$0xff]
    %v1280 = vld [vmem:[#allocation8 + $0x28] sm:$0xff]
    %v1281 = vld [vmem:[#allocation8 + $0x30] sm:$0xff]
    %v1282 = vld [vmem:[#allocation8 + $0x38] sm:$0xff]
    %v1283 = vld [vmem:[#allocation8 + $0x40] sm:$0xff]
    %v1284 = vld [vmem:[#allocation8 + $0x48] sm:$0xff]
    %v1285 = vld [vmem:[#allocation8 + $0x50] sm:$0xff]
    %v1286 = vld [vmem:[#allocation8 + $0x58] sm:$0xff]
    %v1287 = vld [vmem:[#allocation8 + $0x60] sm:$0xff]
    %v1288 = vld [vmem:[#allocation8 + $0x68] sm:$0xff]
    %v1289 = vld [vmem:[#allocation8 + $0x70] sm:$0xff]
    %v1290 = vld [vmem:[#allocation8 + $0x78] sm:$0xff]
    %v1291 = vld [vmem:[#allocation8 + $0x80] sm:$0xff]
    %v1292 = vld [vmem:[#allocation8 + $0x88] sm:$0xff]
    %v1293 = vld [vmem:[#allocation8 + $0x90] sm:$0xff]
    %v1294 = vld [vmem:[#allocation8 + $0x98] sm:$0xff]
    %v1295 = vld [vmem:[#allocation8 + $0xa0] sm:$0xff]
    %v1296 = vld [vmem:[#allocation8 + $0xa8] sm:$0xff]
    %v1297 = vld [vmem:[#allocation8 + $0xb0] sm:$0xff]
    %v1298 = vld [vmem:[#allocation8 + $0xb8] sm:$0xff]
    %v1299 = vld [vmem:[#allocation8 + $0xc0] sm:$0xff]
    %v1300 = vld [vmem:[#allocation8 + $0xc8] sm:$0xff]
    %v1301 = vld [vmem:[#allocation8 + $0xd0] sm:$0xff]
    %v1302 = vld [vmem:[#allocation8 + $0xd8] sm:$0xff]
    %v1303 = vld [vmem:[#allocation8 + $0xe0] sm:$0xff]
    %v1304 = vld [vmem:[#allocation8 + $0xe8] sm:$0xff]
    %v1305 = vld [vmem:[#allocation8 + $0xf0] sm:$0xff]
    %v1306 = vld [vmem:[#allocation8 + $0xf8] sm:$0xff]
    %v1307 = vld [vmem:[%s10] sm:$0x1]
    %v1309 = vlaneseq
    %v1310 = vshrl.u32 %v1309, 7
    %v1311 = vsub.s32 0, %v1310
    %v1312 = vrot.slane %v1307, %v1311
    %1314 = vmatprep.subr.mxu0 0.0
    %1315 = vmatpush1.msra.mxu0 %v1290
    %1316 = vmatprep.subr.mxu0 0.0
    %1317 = vmatpush1.msra.mxu0 %v1289
    %1318 = vmatprep.subr.mxu0 0.0
    %1319 = vmatpush1.msra.mxu0 %v1288
    %1320 = vmatprep.subr.mxu0 0.0
    %1321 = vmatpush1.msra.mxu0 %v1287
    %1322 = vmatprep.subr.mxu0 0.0
    %1323 = vmatpush1.msra.mxu0 %v1286
    %1324 = vmatprep.subr.mxu0 0.0
    %1325 = vmatpush1.msra.mxu0 %v1285
    %1326 = vmatprep.subr.mxu0 0.0
    %1327 = vmatpush1.msra.mxu0 %v1284
    %1328 = vmatprep.subr.mxu0 0.0
    %1329 = vmatpush1.msra.mxu0 %v1283
    %1330 = vmatprep.subr.mxu0 0.0
    %1331 = vmatpush1.msra.mxu0 %v1282
    %1332 = vmatprep.subr.mxu0 0.0
    %1333 = vmatpush1.msra.mxu0 %v1281
    %1334 = vmatprep.subr.mxu0 0.0
    %1335 = vmatpush1.msra.mxu0 %v1280
    %1336 = vmatprep.subr.mxu0 0.0
    %1337 = vmatpush1.msra.mxu0 %v1279
    %1338 = vmatprep.subr.mxu0 0.0
    %1339 = vmatpush1.msra.mxu0 %v1278
    %1340 = vmatprep.subr.mxu0 0.0
    %1341 = vmatpush1.msra.mxu0 %v1277
    %1342 = vmatprep.subr.mxu0 0.0
    %1343 = vmatpush1.msra.mxu0 %v1276
    %1344 = vmatprep.subr.mxu0 0.0
    %1345 = vmatpush1.msra.mxu0 %v1275
    %1346 = vmatprep.subr.mxu0 0.0
    %1347 = vmatpush2.msra.mxu0 %v1306
    %1348 = vmatprep.subr.mxu0 0.0
    %1349 = vmatpush2.msra.mxu0 %v1305
    %1350 = vmatprep.subr.mxu0 0.0
    %1351 = vmatpush2.msra.mxu0 %v1304
    %1352 = vmatprep.subr.mxu0 0.0
    %1353 = vmatpush2.msra.mxu0 %v1303
    %1354 = vmatprep.subr.mxu0 0.0
    %1355 = vmatpush2.msra.mxu0 %v1302
    %1356 = vmatprep.subr.mxu0 0.0
    %1357 = vmatpush2.msra.mxu0 %v1301
    %1358 = vmatprep.subr.mxu0 0.0
    %1359 = vmatpush2.msra.mxu0 %v1300
    %1360 = vmatprep.subr.mxu0 0.0
    %1361 = vmatpush2.msra.mxu0 %v1299
    %1362 = vmatprep.subr.mxu0 0.0
    %1363 = vmatpush2.msra.mxu0 %v1298
    %1364 = vmatprep.subr.mxu0 0.0
    %1365 = vmatpush2.msra.mxu0 %v1297
    %1366 = vmatprep.subr.mxu0 0.0
    %1367 = vmatpush2.msra.mxu0 %v1296
    %1368 = vmatprep.subr.mxu0 0.0
    %1369 = vmatpush2.msra.mxu0 %v1295
    %1370 = vmatprep.subr.mxu0 0.0
    %1371 = vmatpush2.msra.mxu0 %v1294
    %1372 = vmatprep.subr.mxu0 0.0
    %1373 = vmatpush2.msra.mxu0 %v1293
    %1374 = vmatprep.subr.mxu0 0.0
    %1375 = vmatpush2.msra.mxu0 %v1292
    %1376 = vmatprep.subr.mxu0 0.0
    %1377 = vmatpush2.msra.mxu0 %v1291
    %1378 = vmatprep.mubr.f32.mxu0 %v1272
    %1379 = vmatmul.mubr.f32.gmra.mxu0 %v1271
    %v1380 = vpop.f32.mrf.mxu0
    %v1381 = vadd.f32 %v1312, %v1380
    %v1382 = vpop.f32.mrf.mxu0
    %1383 = vmatprep.mubr.f32.mxu0 %v1274
    %1384 = vmatmul.mubr.f32.gmra.mxu0 %v1273
    %v1385 = vpop.f32.mrf.mxu0
    %v1386 = vadd.f32 %v1312, %v1385
    %v1387 = vpop.f32.mrf.mxu0
    %1388 = vdwg.mxu0
    %v1389 = vtanh.pop %v1381
    %v1390 = vtanh.pop %v1386
    %1391 = vst [vmem:[#allocation10] sm:$0xff] %v1389
    %1392 = vst [vmem:[#allocation10 + $0x8] sm:$0xff] %v1390
    // Predicated region
    $region62: #{tpu_custom_call.1} parent=1 // pred_check
      _
    $region63: #{tpu_custom_call.1} parent=1 // pred_check_branch
      %1394 = sbr.rel (0) target = $region65
    $region64: #{tpu_custom_call.1} parent=1 // pred_region
      %s1396 = ssub.s32 256, 256
      %1397 = vsyncadd [#allocation4], %s1396
      %s1398 = sshll.u32 [#allocation10], 4
      %s1399 = int_to_ptr.vmem [resolvable:$true] %s1398
      %1404 = dma.vmem_to_hbm [thread:$0]  %s1399, 256, %s11, [#allocation4], 128, 128, 8
    $region65: #{tpu_custom_call.1} parent=1 // pred_fallthru
      _
    // Predicated region
    $region66: #{tpu_custom_call.1} parent=1 // pred_check
      _
    $region67: #{tpu_custom_call.1} parent=1 // pred_check_branch
      %1406 = sbr.rel (0) target = $region69
    $region68: #{tpu_custom_call.1} parent=1 // pred_region
      %1407 = dma.done [#allocation4], 256
    $region69: #{tpu_custom_call.1} parent=1 // pred_fallthru
      _
    %1408 = vsyncpa [#allocation3], 1
    %1409 = vsyncpa [#allocation6], 1
    %1410 = vsyncpa [#allocation9], 1
    %1411 = vsyncpa [#allocation4], 1

</llo_original>
